<compile_context>
chip_gen: v7x
topology: tpu7x:2x2x1
jax: 0.10.0
libtpu: 0.0.40
codegen_flags: <defaults>
</compile_context>

<pallas_src>
import functools

import jax
import jax.numpy as jnp
from jax.experimental import pallas as pl
from jax.experimental.pallas import tpu as pltpu


def _round_up(x, m):
    return ((x + m - 1) // m) * m


def _quantinize_kernel(x_ref, o_ref, *, size):
    # x_ref: (ROW_TILE, 1) float32 f0 values
    # o_ref: (ROW_TILE, size) float32 one-hot rows
    x = x_ref[...]
    # Truncate toward zero, matching torch `.long()` on a float tensor.
    idx = (x * (size * 0.999)).astype(jnp.int32)                  # (ROW_TILE, 1)
    classes = jax.lax.broadcasted_iota(jnp.int32, o_ref.shape, 1)  # (ROW_TILE, size)
    o_ref[...] = (classes == idx).astype(o_ref.dtype)


def quantinize(x, size, *, row_tile=512):
    """Pallas one-hot quantizer.  x: any float shape; returns x.shape + (size,)."""
    orig_shape = x.shape
    flat = x.reshape(-1).astype(jnp.float32)
    n = flat.shape[0]

    tile = min(row_tile, _round_up(n, 8))        # sublane-aligned row tile
    n_pad = _round_up(n, tile)
    if n_pad != n:
        flat = jnp.pad(flat, (0, n_pad - n))
    x2d = flat.reshape(n_pad, 1)

    out = pl.pallas_call(
        functools.partial(_quantinize_kernel, size=size),
        out_shape=jax.ShapeDtypeStruct((n_pad, size), jnp.float32),
        grid=(n_pad // tile,),
        in_specs=[pl.BlockSpec((tile, 1), lambda i: (i, 0))],
        out_specs=pl.BlockSpec((tile, size), lambda i: (i, 0)),
        compiler_params=pltpu.CompilerParams(
            dimension_semantics=("parallel",)),
    )(x2d)

    if n_pad != n:
        out = out[:n]
    return out.reshape(*orig_shape, size)


if __name__ == "__main__":
    F0_DIM = 8                     # hparams.f0_dim
    B, T = 2, 16                   # small f0-contour batch, as in the VC model

    key = jax.random.PRNGKey(0)
    f0 = jax.random.uniform(key, (B, T), jnp.float32, 0.0, 1.0)   # in [0, 1)

    out = quantinize(f0, F0_DIM)
    jax.block_until_ready(out)

    # Pure-JAX reference of the PyTorch forward.
    ref_idx = (f0 * (F0_DIM * 0.999)).astype(jnp.int32)
    ref = jax.nn.one_hot(ref_idx, F0_DIM, dtype=jnp.float32)

    assert out.shape == (B, T, F0_DIM)
    assert out.dtype == jnp.float32
    assert jnp.array_equal(out, ref)
    print("KERNEL_OK")
</pallas_src>

<mosaic_0001>
module attributes {stable_mosaic.version = 11 : i64} {
  func.func @_quantinize_kernel(%arg0: i32, %arg1: memref<32x1xf32, #tpu.memory_space<vmem>>, %arg2: memref<32x8xf32, #tpu.memory_space<vmem>>) attributes {dimension_semantics = [#tpu.dimension_semantics<parallel>], iteration_bounds = array<i64: 1>, scalar_prefetch = 0 : i64, scratch_operands = 0 : i64, tpu.core_type = #tpu.core_type<tc>, window_params = [{transform_indices = @transform_0, window_bounds = array<i64: 32, 1>}, {transform_indices = @transform_1, window_bounds = array<i64: 32, 8>}]} {
    %c0 = arith.constant 0 : index
    %c0_0 = arith.constant 0 : index
    %0 = vector.load %arg1[%c0, %c0_0] : memref<32x1xf32, #tpu.memory_space<vmem>>, vector<32x1xf32>
    %cst = arith.constant 7.992000e+00 : f32
    %1 = vector.broadcast %cst : f32 to vector<32x1xf32>
    %2 = arith.mulf %0, %1 : vector<32x1xf32>
    %3 = arith.fptosi %2 : vector<32x1xf32> to vector<32x1xi32>
    %4 = tpu.iota {dimensions = array<i32: 1>} : vector<32x8xi32>
    %5 = vector.broadcast %3 : vector<32x1xi32> to vector<32x8xi32>
    %6 = arith.cmpi eq, %4, %5 : vector<32x8xi32>
    %7 = arith.extui %6 : vector<32x8xi1> to vector<32x8xi32>
    %8 = arith.sitofp %7 : vector<32x8xi32> to vector<32x8xf32>
    %c0_1 = arith.constant 0 : index
    %c0_2 = arith.constant 0 : index
    %9 = vector.load %arg2[%c0_1, %c0_2] : memref<32x8xf32, #tpu.memory_space<vmem>>, vector<32x8xf32>
    tpu.vector_store %arg2[%c0_1, %c0_2], %8 {strides = array<i32>} : memref<32x8xf32, #tpu.memory_space<vmem>>, vector<32x8xf32>,
    return
  }
  func.func @transform_0(%arg0: i32) -> (i32, i32) {
    %c0_i32 = arith.constant 0 : i32
    %c0_i32_0 = arith.constant 0 : i32
    return %arg0, %c0_i32 : i32, i32
  }
  func.func @transform_1(%arg0: i32) -> (i32, i32) {
    %c0_i32 = arith.constant 0 : i32
    %c0_i32_0 = arith.constant 0 : i32
    return %arg0, %c0_i32 : i32, i32
  }
}

</mosaic_0001>

<llo_original>
// kernel: tpu_custom_call.1
$region0: #{tpu_custom_call.1}
  #allocation0 [shape = 'u32[]', space=smem, size = 0x4, offset = 0x4, fixed_abs, tag = 'smem constant byte address 0x4 - core index']
  #allocation1 [shape = 'u32[144,128]{1,0:T(1,128)}', space=vmem, size = 0x12000, scoped, tag = 'internal scratch']
  %s0 = inlined_call_operand.vmem [shape: f32[32,1], index: 0, kind: input, shape index: {}]
  %s1 = inlined_call_operand.vmem [shape: f32[32,8], index: 1, kind: output, shape index: {}]
  %s2 = sld [smem:[#allocation0]]
  $region14: #{tpu_custom_call.1} parent=0
    _
  %s4 = ssub.s32 1, %s2
  %s5 = scalar_select 0, %s4, %s2
  // Predicated region
  $region2: #{tpu_custom_call.1} parent=0 // pred_check
    _
  $region3: #{tpu_custom_call.1} parent=0 // pred_check_branch
    %7 = sbr.rel (0) target = $region5
  $region4: #{tpu_custom_call.1} parent=0 // pred_region
    _
  $region5: #{tpu_custom_call.1} parent=0 // pred_fallthru
    _
  %v8 = vld [vmem:[%s0] sm:$0xff]
  %v9 = vld [vmem:[%s0 + $0x8] sm:$0xff]
  %v10 = vld [vmem:[%s0 + $0x10] sm:$0xff]
  %v11 = vld [vmem:[%s0 + $0x18] sm:$0xff]
  %v12 = vmul.f32 %v8, 7.992
  %v13 = vmul.f32 %v9, 7.992
  %v14 = vmul.f32 %v10, 7.992
  %v15 = vmul.f32 %v11, 7.992
  %v16 = vcvt.f32.s32.to.zero.pseudo %v12
  %v17 = vcvt.f32.s32.to.zero.pseudo %v13
  %v18 = vcvt.f32.s32.to.zero.pseudo %v14
  %v19 = vcvt.f32.s32.to.zero.pseudo %v15
  %v20 = vlaneseq
  %v21 = vand.u32 %v20, 127
  %22 = vset.pattern.permute.xlu0 0
  %23 = vperm.xlu0 %22, %v16
  %v24 = vpop.permute.xlu0 %23
  %25 = vset.pattern.permute.xlu0 0
  %26 = vperm.xlu0 %25, %v17
  %v27 = vpop.permute.xlu0 %26
  %28 = vset.pattern.permute.xlu0 0
  %29 = vperm.xlu0 %28, %v18
  %v30 = vpop.permute.xlu0 %29
  %31 = vset.pattern.permute.xlu0 0
  %32 = vperm.xlu0 %31, %v19
  %v33 = vpop.permute.xlu0 %32
  %vm34 = vcmp.eq.s32.totalorder %v21, %v24
  %vm35 = vcmp.eq.s32.totalorder %v21, %v27
  %vm36 = vcmp.eq.s32.totalorder %v21, %v30
  %vm37 = vcmp.eq.s32.totalorder %v21, %v33
  %v38 = vsel %vm34, 1, 0
  %v39 = vsel %vm35, 1, 0
  %v40 = vsel %vm36, 1, 0
  %v41 = vsel %vm37, 1, 0
  %v42 = vcvt.s32.f32 %v38
  %v43 = vcvt.s32.f32 %v39
  %v44 = vcvt.s32.f32 %v40
  %v45 = vcvt.s32.f32 %v41
  %vm46 = vcmask 64512
  %47 = vst.msk [vmem:[%s1] sm:$0xff] %vm46, %v42
  %48 = vst.msk [vmem:[%s1 + $0x8] sm:$0xff] %vm46, %v43
  %49 = vst.msk [vmem:[%s1 + $0x10] sm:$0xff] %vm46, %v44
  %50 = vst.msk [vmem:[%s1 + $0x18] sm:$0xff] %vm46, %v45
  // Predicated region
  $region6: #{tpu_custom_call.1} parent=0 // pred_check
    _
  $region7: #{tpu_custom_call.1} parent=0 // pred_check_branch
    %52 = sbr.rel (0) target = $region9
  $region8: #{tpu_custom_call.1} parent=0 // pred_region
    _
  $region9: #{tpu_custom_call.1} parent=0 // pred_fallthru
    _
  // Predicated region
  $region10: #{tpu_custom_call.1} parent=0 // pred_check
    _
  $region11: #{tpu_custom_call.1} parent=0 // pred_check_branch
    %54 = sbr.rel (0) target = $region13
  $region12: #{tpu_custom_call.1} parent=0 // pred_region
    _
  $region13: #{tpu_custom_call.1} parent=0 // pred_fallthru
    _

</llo_original>
